<compile_context>
chip_gen: v7x
topology: tpu7x:2x2x1
jax: 0.10.0
libtpu: 0.0.40
codegen_flags: <defaults>
</compile_context>

<pallas_src>
import jax
import jax.numpy as jnp
from jax.experimental import pallas as pl
from jax.experimental.pallas import tpu as pltpu

NUM_INPUTS = 4    # CartPole-v1 observation_space.shape[0]
NUM_OUTPUTS = 2   # CartPole-v1 action_space.n

_LANE = 128       # TPU lane width


def _linear_kernel(x_ref, w_ref, b_ref, o_ref):
    """x_ref: (IN, TB) f32 VMEM; w_ref: (OUT, IN) f32 SMEM; b_ref: (OUT,) f32 SMEM;
    o_ref: (OUT, TB) f32 VMEM.  y[o, :] = sum_k w[o, k] * x[k, :] + b[o]."""
    x = x_ref[...]                                   # (IN, TB), one lane-dense load
    for o in range(NUM_OUTPUTS):                     # fully unrolled: 8 VPU FMAs total
        acc = x[0:1, :] * w_ref[o, 0]
        for k in range(1, NUM_INPUTS):
            acc = acc + x[k:k + 1, :] * w_ref[o, k]
        o_ref[o:o + 1, :] = acc + b_ref[o]           # lane-dense store


def _pick_tile(padded_b, max_tb=1024):
    """Largest power-of-two tile in [128, max_tb] that divides padded_b."""
    tb = _LANE
    while tb * 2 <= max_tb and padded_b % (tb * 2) == 0:
        tb *= 2
    return tb


def neural_network_forward(x, weight, bias):
    """x: (B, 4) f32; weight: (2, 4) f32 (torch layout); bias: (2,) f32 -> (B, 2) f32."""
    B = x.shape[0]

    # Lane-major layout: put batch on the lane axis; pad to a multiple of 128 lanes.
    x_t = x.T                                        # (IN, B)   -- plain-JAX glue
    padded_b = -(-B // _LANE) * _LANE
    if padded_b != B:
        x_t = jnp.pad(x_t, ((0, 0), (0, padded_b - B)))

    tb = _pick_tile(padded_b)
    grid = (padded_b // tb,)

    out_t = pl.pallas_call(
        _linear_kernel,
        out_shape=jax.ShapeDtypeStruct((NUM_OUTPUTS, padded_b), jnp.float32),
        grid=grid,
        in_specs=[
            # batch tile: second-to-last dim equals full extent (4), last dim is a
            # multiple of 128 -> legal block, lane-dense.
            pl.BlockSpec((NUM_INPUTS, tb), lambda i: (0, i)),
            # weights / bias are 10 scalars: keep them whole in SMEM.
            pl.BlockSpec(memory_space=pltpu.MemorySpace.SMEM),
            pl.BlockSpec(memory_space=pltpu.MemorySpace.SMEM),
        ],
        out_specs=pl.BlockSpec((NUM_OUTPUTS, tb), lambda i: (0, i)),
        compiler_params=pltpu.CompilerParams(
            dimension_semantics=("parallel",)),      # v7x: shard batch over 2 TCs
    )(x_t, weight, bias)

    return out_t[:, :B].T                            # back to (B, OUT)


def init_params(key):
    """Deterministic init mimicking torch.nn.Linear default U(-1/sqrt(in), 1/sqrt(in))."""
    kw, kb = jax.random.split(key)
    bound = 1.0 / (NUM_INPUTS ** 0.5)
    weight = jax.random.uniform(
        kw, (NUM_OUTPUTS, NUM_INPUTS), jnp.float32, minval=-bound, maxval=bound)
    bias = jax.random.uniform(
        kb, (NUM_OUTPUTS,), jnp.float32, minval=-bound, maxval=bound)
    return weight, bias


if __name__ == "__main__":
    key = jax.random.PRNGKey(0)
    k_params, k_x = jax.random.split(key)

    weight, bias = init_params(k_params)

    batch = 8   # small RL-rollout sized batch
    x = jax.random.normal(k_x, (batch, NUM_INPUTS), jnp.float32)

    out = neural_network_forward(x, weight, bias)
    out = jax.block_until_ready(out)

    ref = x @ weight.T + bias
    assert out.shape == (batch, NUM_OUTPUTS)
    assert jnp.allclose(out, ref, atol=1e-5, rtol=1e-5)

    # Also exercise the padded, multi-step tiled path.
    x_big = jax.random.normal(jax.random.PRNGKey(1), (300, NUM_INPUTS), jnp.float32)
    out_big = jax.block_until_ready(neural_network_forward(x_big, weight, bias))
    assert jnp.allclose(out_big, x_big @ weight.T + bias, atol=1e-5, rtol=1e-5)

    print("KERNEL_OK")
</pallas_src>

<mosaic_0001>
module attributes {stable_mosaic.version = 11 : i64} {
  func.func @_linear_kernel(%arg0: i32, %arg1: memref<4x128xf32, #tpu.memory_space<vmem>>, %arg2: memref<2x4xf32, #tpu.memory_space<smem>>, %arg3: memref<2xf32, #tpu.memory_space<smem>>, %arg4: memref<2x128xf32, #tpu.memory_space<vmem>>) attributes {dimension_semantics = [#tpu.dimension_semantics<parallel>], iteration_bounds = array<i64: 1>, scalar_prefetch = 0 : i64, scratch_operands = 0 : i64, tpu.core_type = #tpu.core_type<tc>, window_params = [{transform_indices = @transform_0, window_bounds = array<i64: 4, 128>}, {transform_indices = @transform_1, window_bounds = array<i64: 2, 4>}, {transform_indices = @transform_2, window_bounds = array<i64: 2>}, {transform_indices = @transform_3, window_bounds = array<i64: 2, 128>}]} {
    %c0 = arith.constant 0 : index
    %c0_0 = arith.constant 0 : index
    %0 = vector.load %arg1[%c0, %c0_0] : memref<4x128xf32, #tpu.memory_space<vmem>>, vector<4x128xf32>
    %1 = vector.extract_strided_slice %0 {offsets = [0, 0], sizes = [1, 128], strides = [1, 1]} : vector<4x128xf32> to vector<1x128xf32>
    %c0_1 = arith.constant 0 : index
    %c0_2 = arith.constant 0 : index
    %2 = memref.load %arg2[%c0_1, %c0_2] : memref<2x4xf32, #tpu.memory_space<smem>>
    %3 = vector.broadcast %2 : f32 to vector<1x128xf32>
    %4 = arith.mulf %1, %3 : vector<1x128xf32>
    %5 = vector.extract_strided_slice %0 {offsets = [1, 0], sizes = [1, 128], strides = [1, 1]} : vector<4x128xf32> to vector<1x128xf32>
    %c0_3 = arith.constant 0 : index
    %c1 = arith.constant 1 : index
    %6 = memref.load %arg2[%c0_3, %c1] : memref<2x4xf32, #tpu.memory_space<smem>>
    %7 = vector.broadcast %6 : f32 to vector<1x128xf32>
    %8 = arith.mulf %5, %7 : vector<1x128xf32>
    %9 = arith.addf %4, %8 : vector<1x128xf32>
    %10 = vector.extract_strided_slice %0 {offsets = [2, 0], sizes = [1, 128], strides = [1, 1]} : vector<4x128xf32> to vector<1x128xf32>
    %c0_4 = arith.constant 0 : index
    %c2 = arith.constant 2 : index
    %11 = memref.load %arg2[%c0_4, %c2] : memref<2x4xf32, #tpu.memory_space<smem>>
    %12 = vector.broadcast %11 : f32 to vector<1x128xf32>
    %13 = arith.mulf %10, %12 : vector<1x128xf32>
    %14 = arith.addf %9, %13 : vector<1x128xf32>
    %15 = vector.extract_strided_slice %0 {offsets = [3, 0], sizes = [1, 128], strides = [1, 1]} : vector<4x128xf32> to vector<1x128xf32>
    %c0_5 = arith.constant 0 : index
    %c3 = arith.constant 3 : index
    %16 = memref.load %arg2[%c0_5, %c3] : memref<2x4xf32, #tpu.memory_space<smem>>
    %17 = vector.broadcast %16 : f32 to vector<1x128xf32>
    %18 = arith.mulf %15, %17 : vector<1x128xf32>
    %19 = arith.addf %14, %18 : vector<1x128xf32>
    %c0_6 = arith.constant 0 : index
    %20 = memref.load %arg3[%c0_6] : memref<2xf32, #tpu.memory_space<smem>>
    %21 = vector.broadcast %20 : f32 to vector<1x128xf32>
    %22 = arith.addf %19, %21 : vector<1x128xf32>
    %c0_7 = arith.constant 0 : index
    %c0_8 = arith.constant 0 : index
    %23 = vector.load %arg4[%c0_7, %c0_8] : memref<2x128xf32, #tpu.memory_space<vmem>>, vector<1x128xf32>
    tpu.vector_store %arg4[%c0_7, %c0_8], %22 {strides = array<i32>} : memref<2x128xf32, #tpu.memory_space<vmem>>, vector<1x128xf32>,
    %24 = vector.extract_strided_slice %0 {offsets = [0, 0], sizes = [1, 128], strides = [1, 1]} : vector<4x128xf32> to vector<1x128xf32>
    %c1_9 = arith.constant 1 : index
    %c0_10 = arith.constant 0 : index
    %25 = memref.load %arg2[%c1_9, %c0_10] : memref<2x4xf32, #tpu.memory_space<smem>>
    %26 = vector.broadcast %25 : f32 to vector<1x128xf32>
    %27 = arith.mulf %24, %26 : vector<1x128xf32>
    %28 = vector.extract_strided_slice %0 {offsets = [1, 0], sizes = [1, 128], strides = [1, 1]} : vector<4x128xf32> to vector<1x128xf32>
    %c1_11 = arith.constant 1 : index
    %c1_12 = arith.constant 1 : index
    %29 = memref.load %arg2[%c1_11, %c1_12] : memref<2x4xf32, #tpu.memory_space<smem>>
    %30 = vector.broadcast %29 : f32 to vector<1x128xf32>
    %31 = arith.mulf %28, %30 : vector<1x128xf32>
    %32 = arith.addf %27, %31 : vector<1x128xf32>
    %33 = vector.extract_strided_slice %0 {offsets = [2, 0], sizes = [1, 128], strides = [1, 1]} : vector<4x128xf32> to vector<1x128xf32>
    %c1_13 = arith.constant 1 : index
    %c2_14 = arith.constant 2 : index
    %34 = memref.load %arg2[%c1_13, %c2_14] : memref<2x4xf32, #tpu.memory_space<smem>>
    %35 = vector.broadcast %34 : f32 to vector<1x128xf32>
    %36 = arith.mulf %33, %35 : vector<1x128xf32>
    %37 = arith.addf %32, %36 : vector<1x128xf32>
    %38 = vector.extract_strided_slice %0 {offsets = [3, 0], sizes = [1, 128], strides = [1, 1]} : vector<4x128xf32> to vector<1x128xf32>
    %c1_15 = arith.constant 1 : index
    %c3_16 = arith.constant 3 : index
    %39 = memref.load %arg2[%c1_15, %c3_16] : memref<2x4xf32, #tpu.memory_space<smem>>
    %40 = vector.broadcast %39 : f32 to vector<1x128xf32>
    %41 = arith.mulf %38, %40 : vector<1x128xf32>
    %42 = arith.addf %37, %41 : vector<1x128xf32>
    %c1_17 = arith.constant 1 : index
    %43 = memref.load %arg3[%c1_17] : memref<2xf32, #tpu.memory_space<smem>>
    %44 = vector.broadcast %43 : f32 to vector<1x128xf32>
    %45 = arith.addf %42, %44 : vector<1x128xf32>
    %c1_18 = arith.constant 1 : index
    %c0_19 = arith.constant 0 : index
    %46 = vector.load %arg4[%c1_18, %c0_19] : memref<2x128xf32, #tpu.memory_space<vmem>>, vector<1x128xf32>
    tpu.vector_store %arg4[%c1_18, %c0_19], %45 {strides = array<i32>} : memref<2x128xf32, #tpu.memory_space<vmem>>, vector<1x128xf32>,
    return
  }
  func.func @transform_0(%arg0: i32) -> (i32, i32) {
    %c0_i32 = arith.constant 0 : i32
    %c0_i32_0 = arith.constant 0 : i32
    return %c0_i32, %arg0 : i32, i32
  }
  func.func @transform_1(%arg0: i32) -> (i32, i32) {
    %c0_i32 = arith.constant 0 : i32
    %c0_i32_0 = arith.constant 0 : i32
    %c0_i32_1 = arith.constant 0 : i32
    return %c0_i32, %c0_i32_0 : i32, i32
  }
  func.func @transform_2(%arg0: i32) -> i32 {
    %c0_i32 = arith.constant 0 : i32
    %c0_i32_0 = arith.constant 0 : i32
    return %c0_i32 : i32
  }
  func.func @transform_3(%arg0: i32) -> (i32, i32) {
    %c0_i32 = arith.constant 0 : i32
    %c0_i32_0 = arith.constant 0 : i32
    return %c0_i32, %arg0 : i32, i32
  }
}

</mosaic_0001>

<llo_original>
// kernel: tpu_custom_call.1
$region0: #{tpu_custom_call.1}
  #allocation0 [shape = 'u32[]', space=smem, size = 0x4, offset = 0x4, fixed_abs, tag = 'smem constant byte address 0x4 - core index']
  #allocation1 [shape = 'u32[144,128]{1,0:T(1,128)}', space=vmem, size = 0x12000, scoped, tag = 'internal scratch']
  %s0 = inlined_call_operand.hbm [shape: f32[4,128], index: 0, kind: input, shape index: {}]
  %s1 = inlined_call_operand.vmem [shape: f32[2,4], index: 1, kind: input, shape index: {}]
  %s2 = inlined_call_operand.vmem [shape: f32[2], index: 2, kind: input, shape index: {}]
  %s3 = inlined_call_operand.hbm [shape: f32[2,128], index: 3, kind: output, shape index: {}]
  %s4 = sld [smem:[#allocation0]]
  $region34: #{tpu_custom_call.1} parent=0
    _
  %s6 = ssub.s32 1, %s4
  %s7 = scalar_select 0, %s6, %s4
  $region1: #{tpu_custom_call.1} parent=0
    #allocation2 [shape = 'u8[2048]{0}', space=vmem, size = 0x800, scoped, tag = 'input window, operand 0, single buffered']
    #allocation3 [shape = 's32[1]{0}', space=sflag, size = 0x4, scoped, tag = 'scoped memory for tpu_custom_call.1']
    #allocation4 [shape = 's32[1]{0}', space=sflag, size = 0x4, scoped, tag = 'scoped memory for tpu_custom_call.1']
    #allocation5 [shape = 's32[1]{0}', space=sflag, size = 0x4, scoped, tag = 'scoped memory for tpu_custom_call.1']
    #allocation6 [shape = 'u8[1024]{0}', space=smem, size = 0x400, scoped, tag = 'input window, operand 1, single buffered']
    #allocation7 [shape = 'u8[512]{0}', space=smem, size = 0x200, scoped, tag = 'input window, operand 2, single buffered']
    #allocation8 [shape = 's32[1]{0}', space=sflag, size = 0x4, scoped, tag = 'scoped memory for tpu_custom_call.1']
    #allocation9 [shape = 'u8[1024]{0}', space=vmem, size = 0x400, scoped, tag = 'output window, operand 0, single buffered']
    %8 = vsyncpa [#allocation3], 0
    %9 = vsyncpa [#allocation5], 0
    %10 = vsyncpa [#allocation8], 0
    %11 = vsyncpa [#allocation4], 0
    // Predicated region
    $region2: #{tpu_custom_call.1} parent=1 // pred_check
      _
    $region3: #{tpu_custom_call.1} parent=1 // pred_check_branch
      %13 = sbr.rel (0) target = $region5
    $region4: #{tpu_custom_call.1} parent=1 // pred_region
      %s15 = ssub.s32 64, 64
      %16 = vsyncadd [#allocation3], %s15
      %s18 = sshll.u32 [#allocation2], 4
      %s19 = int_to_ptr.vmem [resolvable:$true] %s18
      %21 = dma.hbm_to_vmem [thread:$0]  %s0, 64, %s19, [#allocation3]
    $region5: #{tpu_custom_call.1} parent=1 // pred_fallthru
      _
    // Predicated region
    $region6: #{tpu_custom_call.1} parent=1 // pred_check
      _
    $region7: #{tpu_custom_call.1} parent=1 // pred_check_branch
      %23 = sbr.rel (0) target = $region9
    $region8: #{tpu_custom_call.1} parent=1 // pred_region
      %s25 = ssub.s32 32, 32
      %26 = vsyncadd [#allocation5], %s25
      %s28 = sshll.u32 %s1, 4
      %s29 = int_to_ptr.vmem [resolvable:$true] %s28
      %31 = dma.vmem_to_smem %s29, 32, [#allocation6], [#allocation5]
    $region9: #{tpu_custom_call.1} parent=1 // pred_fallthru
      _
    // Predicated region
    $region10: #{tpu_custom_call.1} parent=1 // pred_check
      _
    $region11: #{tpu_custom_call.1} parent=1 // pred_check_branch
      %33 = sbr.rel (0) target = $region13
    $region12: #{tpu_custom_call.1} parent=1 // pred_region
      %s35 = ssub.s32 16, 16
      %36 = vsyncadd [#allocation8], %s35
      %s38 = sshll.u32 %s2, 4
      %s39 = int_to_ptr.vmem [resolvable:$true] %s38
      %41 = dma.vmem_to_smem %s39, 16, [#allocation7], [#allocation8]
    $region13: #{tpu_custom_call.1} parent=1 // pred_fallthru
      _
    // Predicated region
    $region14: #{tpu_custom_call.1} parent=1 // pred_check
      _
    $region15: #{tpu_custom_call.1} parent=1 // pred_check_branch
      %43 = sbr.rel (0) target = $region17
    $region16: #{tpu_custom_call.1} parent=1 // pred_region
      %44 = dma.done [#allocation3], 64
    $region17: #{tpu_custom_call.1} parent=1 // pred_fallthru
      _
    // Predicated region
    $region18: #{tpu_custom_call.1} parent=1 // pred_check
      _
    $region19: #{tpu_custom_call.1} parent=1 // pred_check_branch
      %46 = sbr.rel (0) target = $region21
    $region20: #{tpu_custom_call.1} parent=1 // pred_region
      %47 = dma.done [#allocation5], 32
    $region21: #{tpu_custom_call.1} parent=1 // pred_fallthru
      _
    // Predicated region
    $region22: #{tpu_custom_call.1} parent=1 // pred_check
      _
    $region23: #{tpu_custom_call.1} parent=1 // pred_check_branch
      %49 = sbr.rel (0) target = $region25
    $region24: #{tpu_custom_call.1} parent=1 // pred_region
      %50 = dma.done [#allocation8], 16
    $region25: #{tpu_custom_call.1} parent=1 // pred_fallthru
      _
    %51 = sfence
    %v52 = vld [vmem:[#allocation2] sm:$0xf]
    %s53 = sld [smem:[#allocation6]]
    %v54 = vstv %s53
    %v55 = vmul.f32 %v52, %v54
    %s56 = sld [smem:[#allocation6 + $0x1]]
    %v57 = vstv %s56
    %v58 = vmul.f32 %v52, %v57
    %v60 = vrot.slane %v58, 1
    %v62 = vadd.f32 %v55, %v60
    %s63 = sld [smem:[#allocation6 + $0x2]]
    %v64 = vstv %s63
    %v65 = vmul.f32 %v52, %v64
    %v67 = vrot.slane %v65, 2
    %v69 = vadd.f32 %v62, %v67
    %s70 = sld [smem:[#allocation6 + $0x3]]
    %v71 = vstv %s70
    %v72 = vmul.f32 %v52, %v71
    %v74 = vrot.slane %v72, 3
    %v76 = vadd.f32 %v69, %v74
    %s77 = sld [smem:[#allocation7]]
    %v78 = vstv %s77
    %v79 = vadd.f32 %v76, %v78
    %80 = vst [vmem:[#allocation9] sm:$0x1] %v79
    %s81 = sld [smem:[#allocation6 + $0x80]]
    %v82 = vstv %s81
    %v83 = vmul.f32 %v52, %v82
    %s84 = sld [smem:[#allocation6 + $0x81]]
    %v85 = vstv %s84
    %v86 = vmul.f32 %v52, %v85
    %v88 = vrot.slane %v86, 1
    %v90 = vadd.f32 %v83, %v88
    %s91 = sld [smem:[#allocation6 + $0x82]]
    %v92 = vstv %s91
    %v93 = vmul.f32 %v52, %v92
    %v95 = vrot.slane %v93, 2
    %v97 = vadd.f32 %v90, %v95
    %s98 = sld [smem:[#allocation6 + $0x83]]
    %v99 = vstv %s98
    %v100 = vmul.f32 %v52, %v99
    %v102 = vrot.slane %v100, 3
    %v104 = vadd.f32 %v97, %v102
    %s105 = sld [smem:[#allocation7 + $0x1]]
    %v106 = vstv %s105
    %v107 = vadd.f32 %v104, %v106
    %108 = vst [vmem:[#allocation9 + $0x1] sm:$0x1] %v107
    // Predicated region
    $region26: #{tpu_custom_call.1} parent=1 // pred_check
      _
    $region27: #{tpu_custom_call.1} parent=1 // pred_check_branch
      %110 = sbr.rel (0) target = $region29
    $region28: #{tpu_custom_call.1} parent=1 // pred_region
      %s112 = ssub.s32 32, 32
      %113 = vsyncadd [#allocation4], %s112
      %s115 = sshll.u32 [#allocation9], 4
      %s116 = int_to_ptr.vmem [resolvable:$true] %s115
      %118 = dma.vmem_to_hbm [thread:$0]  %s116, 32, %s3, [#allocation4]
    $region29: #{tpu_custom_call.1} parent=1 // pred_fallthru
      _
    // Predicated region
    $region30: #{tpu_custom_call.1} parent=1 // pred_check
      _
    $region31: #{tpu_custom_call.1} parent=1 // pred_check_branch
      %120 = sbr.rel (0) target = $region33
    $region32: #{tpu_custom_call.1} parent=1 // pred_region
      %121 = dma.done [#allocation4], 32
    $region33: #{tpu_custom_call.1} parent=1 // pred_fallthru
      _
    %122 = vsyncpa [#allocation3], 1
    %123 = vsyncpa [#allocation4], 1
    %124 = vsyncpa [#allocation5], 1
    %125 = vsyncpa [#allocation8], 1

</llo_original>
